<compile_context>
chip_gen: v7x
topology: tpu7x:2x2x1
jax: 0.10.0
libtpu: 0.0.40
codegen_flags: <defaults>
</compile_context>

<pallas_src>
import functools

import jax
import jax.numpy as jnp
from jax.experimental import pallas as pl
from jax.experimental.pallas import tpu as pltpu


def _round_up(x, m):
    return ((x + m - 1) // m) * m


def _vmem_capacity_bytes():
    try:
        return int(pltpu.get_tpu_info().vmem_capacity_bytes)
    except Exception:
        return 128 * 1024 * 1024  # v5e/v6e default


_VMEM_CAP = _vmem_capacity_bytes()
_SMALL_VMEM = _VMEM_CAP <= 80 * 1024 * 1024          # v7x-like (64 MiB / TC)

# Roofline crossovers: v6e ~918 TF/s / 1.4 TB/s -> tm >= ~640;
#                      v7x ~996 TF/s / 3.2 TB/s -> tm >= ~320.
_DEFAULT_ROW_TILE = 512 if _SMALL_VMEM else 768
_DEFAULT_H_CHUNK = 512 if _SMALL_VMEM else 1024
_FAST_WEIGHT_BUDGET = (12 if _SMALL_VMEM else 20) * 1024 * 1024
_VMEM_HEADROOM = 8 * 1024 * 1024
_VMEM_MARGIN = 4 * 1024 * 1024


def _layernorm_mask(y, x_f32, b2, gamma, beta, mask, eps):
    """b2 + residual, LayerNorm over features, affine, query mask — all f32."""
    y = y + b2 + x_f32
    mean = jnp.mean(y, axis=-1, keepdims=True)
    yc = y - mean
    var = jnp.mean(yc * yc, axis=-1, keepdims=True)
    y = yc * jax.lax.rsqrt(var + eps)
    y = y * gamma + beta
    return y * mask


def _ffn_fused_kernel(x_ref, w1_ref, b1_ref, w2_ref, b2_ref, gamma_ref,
                      beta_ref, mask_ref, o_ref, *, eps):
    """Weights-resident path: single grid axis over row tiles, no accumulator."""
    h = jnp.dot(x_ref[...], w1_ref[...], preferred_element_type=jnp.float32)
    h = jnp.maximum(h + b1_ref[...].astype(jnp.float32), 0.0)
    y = jnp.dot(h.astype(w2_ref.dtype), w2_ref[...],
                preferred_element_type=jnp.float32)
    y = _layernorm_mask(y, x_ref[...].astype(jnp.float32),
                        b2_ref[...].astype(jnp.float32),
                        gamma_ref[...].astype(jnp.float32),
                        beta_ref[...].astype(jnp.float32),
                        mask_ref[...].astype(jnp.float32), eps)
    o_ref[...] = y.astype(o_ref.dtype)


def _ffn_chunked_kernel(x_ref, w1_ref, b1_ref, w2_ref, b2_ref, gamma_ref,
                        beta_ref, mask_ref, o_ref, acc_ref, *, eps):
    """H-chunked reduction path with f32 VMEM accumulator."""
    h_idx = pl.program_id(1)

    @pl.when(h_idx == 0)
    def _():
        acc_ref[...] = jnp.zeros_like(acc_ref)

    # Inner step: MXU matmuls in native dtype with f32 accumulation + ReLU.
    h = jnp.dot(x_ref[...], w1_ref[...], preferred_element_type=jnp.float32)
    h = jnp.maximum(h + b1_ref[...].astype(jnp.float32), 0.0)
    acc_ref[...] += jnp.dot(h.astype(w2_ref.dtype), w2_ref[...],
                            preferred_element_type=jnp.float32)

    @pl.when(h_idx == pl.num_programs(1) - 1)
    def _():
        y = _layernorm_mask(acc_ref[...], x_ref[...].astype(jnp.float32),
                            b2_ref[...].astype(jnp.float32),
                            gamma_ref[...].astype(jnp.float32),
                            beta_ref[...].astype(jnp.float32),
                            mask_ref[...].astype(jnp.float32), eps)
        o_ref[...] = y.astype(o_ref.dtype)


@functools.partial(jax.jit, static_argnames=("row_tile", "h_chunk"))
def ffn_forward(x, w1, b1, w2, b2, gamma, beta, mask=None, *,
                row_tile=None, h_chunk=None):
    """x: [B, T, D]; w1: [D, H]; b1: [H]; w2: [H, D]; b2: [D];
    gamma/beta: [D]; mask: [B, T] or None. Returns [B, T, D] in x.dtype."""
    B, T, D = x.shape
    H = w1.shape[1]
    rows = B * T
    eps = 1e-5  # torch.nn.LayerNorm default

    user_h_chunk = h_chunk is not None
    if row_tile is None:
        row_tile = _DEFAULT_ROW_TILE
    if h_chunk is None:
        h_chunk = _DEFAULT_H_CHUNK

    x_isz = jnp.dtype(x.dtype).itemsize
    w_isz = jnp.dtype(w1.dtype).itemsize

    # Row tile: 16-aligned (legal sublane count for bf16/f32), <= row_tile.
    tm = _round_up(min(row_tile, _round_up(rows, 16)), 16)

    # ---- choose H chunking -------------------------------------------------
    weight_bytes = 2 * D * H * w_isz + (H + D) * 4
    if (not user_h_chunk) and weight_bytes <= _FAST_WEIGHT_BUDGET:
        th = H                      # weights-resident fast path
    elif H <= h_chunk:
        th = H                      # single chunk anyway
    else:
        th = max(128, (h_chunk // 128) * 128)   # 128-aligned chunk
    Hp = _round_up(H, th)
    n_h = Hp // th
    single_chunk = (n_h == 1)

    # Megacore: when everything fits one row tile, split it so both TCs on a
    # multi-core chip get work (free here: weights stay resident).
    if single_chunk and rows >= 64 and rows <= tm:
        tm = _round_up(-(-rows // 2), 16)

    padded_rows = _round_up(rows, tm)
    n_row = padded_rows // tm

    # ---- operand preparation (pads are numerically inert) -------------------
    if Hp != H:
        w1 = jnp.pad(w1, ((0, 0), (0, Hp - H)))
        b1 = jnp.pad(b1, ((0, Hp - H),))
        w2 = jnp.pad(w2, ((0, Hp - H), (0, 0)))

    x2 = x.reshape(rows, D)
    if mask is None:
        mask2 = jnp.ones((rows, 1), jnp.float32)
    else:
        mask2 = mask.reshape(rows, 1).astype(jnp.float32)
    if padded_rows != rows:
        pad = padded_rows - rows
        x2 = jnp.pad(x2, ((0, pad), (0, 0)))
        mask2 = jnp.pad(mask2, ((0, pad), (0, 0)))

    b1_2 = b1.reshape(1, Hp)
    b2_2 = b2.reshape(1, D)
    g_2 = gamma.reshape(1, D)
    be_2 = beta.reshape(1, D)

    # ---- VMEM estimate + explicit (gen-safe) limit ---------------------------
    io_bytes = 2 * 2 * tm * D * x_isz                 # x + out, double-buffered
    wchunk_bytes = 2 * 2 * D * th * w_isz             # W1 + W2 chunk, double-buffered
    small_bytes = 2 * ((Hp + 3 * D) * 4 + tm * 4)     # biases / affine / mask
    interm_bytes = tm * th * (4 + w_isz)              # f32 ReLU interm + cast copy
    acc_bytes = 0 if single_chunk else tm * D * 4     # f32 accumulator scratch
    ln_tmp_bytes = 2 * tm * D * 4                     # f32 temporaries in finalize
    est = io_bytes + wchunk_bytes + small_bytes + interm_bytes + acc_bytes \
        + ln_tmp_bytes
    vmem_limit = int(min(max(est + _VMEM_MARGIN, 16 * 1024 * 1024),
                         _VMEM_CAP - _VMEM_HEADROOM))

    # ---- advisory cost estimate (weights re-streamed per row tile when chunked)
    w_stream = 1 if single_chunk else n_row
    bytes_accessed = int(2 * padded_rows * D * x_isz
                         + w_stream * (2 * D * Hp * w_isz + Hp * 4)
                         + 3 * D * 4 + padded_rows * 4)
    cost = pl.CostEstimate(flops=4 * rows * D * H,
                           transcendentals=rows,
                           bytes_accessed=bytes_accessed)

    out_shape = jax.ShapeDtypeStruct((padded_rows, D), x.dtype)

    if single_chunk:
        grid_spec = pltpu.PrefetchScalarGridSpec(
            num_scalar_prefetch=0,
            grid=(n_row,),
            in_specs=[
                pl.BlockSpec((tm, D), lambda i: (i, 0)),     # x row tile
                pl.BlockSpec((D, Hp), lambda i: (0, 0)),     # W1 (resident)
                pl.BlockSpec((1, Hp), lambda i: (0, 0)),     # b1
                pl.BlockSpec((Hp, D), lambda i: (0, 0)),     # W2 (resident)
                pl.BlockSpec((1, D), lambda i: (0, 0)),      # b2
                pl.BlockSpec((1, D), lambda i: (0, 0)),      # gamma
                pl.BlockSpec((1, D), lambda i: (0, 0)),      # beta
                pl.BlockSpec((tm, 1), lambda i: (i, 0)),     # mask row tile
            ],
            out_specs=pl.BlockSpec((tm, D), lambda i: (i, 0)),
        )
        kernel = functools.partial(_ffn_fused_kernel, eps=eps)
        dim_sem = ("parallel",)
    else:
        grid_spec = pltpu.PrefetchScalarGridSpec(
            num_scalar_prefetch=0,
            grid=(n_row, n_h),
            in_specs=[
                pl.BlockSpec((tm, D), lambda i, h: (i, 0)),   # x row tile
                pl.BlockSpec((D, th), lambda i, h: (0, h)),   # W1 chunk
                pl.BlockSpec((1, th), lambda i, h: (0, h)),   # b1 chunk
                pl.BlockSpec((th, D), lambda i, h: (h, 0)),   # W2 chunk
                pl.BlockSpec((1, D), lambda i, h: (0, 0)),    # b2
                pl.BlockSpec((1, D), lambda i, h: (0, 0)),    # gamma
                pl.BlockSpec((1, D), lambda i, h: (0, 0)),    # beta
                pl.BlockSpec((tm, 1), lambda i, h: (i, 0)),   # mask row tile
            ],
            out_specs=pl.BlockSpec((tm, D), lambda i, h: (i, 0)),
            scratch_shapes=[pltpu.VMEM((tm, D), jnp.float32)],
        )
        kernel = functools.partial(_ffn_chunked_kernel, eps=eps)
        dim_sem = ("parallel", "arbitrary")

    out = pl.pallas_call(
        kernel,
        out_shape=out_shape,
        grid_spec=grid_spec,
        compiler_params=pltpu.CompilerParams(
            dimension_semantics=dim_sem,
            vmem_limit_bytes=vmem_limit),
        cost_estimate=cost,
    )(x2, w1, b1_2, w2, b2_2, g_2, be_2, mask2)

    return out[:rows].reshape(B, T, D)


def _reference(x, w1, b1, w2, b2, gamma, beta, mask, eps=1e-5):
    h = jnp.maximum(x @ w1 + b1, 0.0)
    y = h @ w2 + b2 + x
    mean = y.mean(-1, keepdims=True)
    var = ((y - mean) ** 2).mean(-1, keepdims=True)
    y = (y - mean) / jnp.sqrt(var + eps)
    y = y * gamma + beta
    return y * mask[..., None]


def _make_inputs(key, B, T, D, H, dtype=jnp.float32):
    kx, kw1, kb1, kw2, kb2, kg, kbt, km = jax.random.split(key, 8)
    x = jax.random.normal(kx, (B, T, D), jnp.float32)
    w1 = jax.random.uniform(kw1, (D, H), jnp.float32, -1.0, 1.0) / jnp.sqrt(D)
    b1 = jax.random.uniform(kb1, (H,), jnp.float32, -1.0, 1.0) / jnp.sqrt(D)
    w2 = jax.random.uniform(kw2, (H, D), jnp.float32, -1.0, 1.0) / jnp.sqrt(H)
    b2 = jax.random.uniform(kb2, (D,), jnp.float32, -1.0, 1.0) / jnp.sqrt(H)
    gamma = 1.0 + 0.05 * jax.random.normal(kg, (D,), jnp.float32)
    beta = 0.05 * jax.random.normal(kbt, (D,), jnp.float32)
    mask = (jax.random.uniform(km, (B, T)) > 0.3).astype(jnp.float32)
    return (x.astype(dtype), w1.astype(dtype), b1, w2.astype(dtype), b2,
            gamma, beta, mask, x, w1, w2)


if __name__ == "__main__":
    key = jax.random.PRNGKey(0)
    k1, k2 = jax.random.split(key)

    # 1) Small model (num_hidden=32 -> FFN hidden=64), ragged rows (B*T=14):
    #    exercises the weights-resident fused fast path.
    B, T, D = 2, 7, 32
    H = 2 * D
    (x, w1, b1, w2, b2, gamma, beta, mask, xf, w1f, w2f) = _make_inputs(
        k1, B, T, D, H, jnp.float32)
    ref = _reference(xf, w1f, b1, w2f, b2, gamma, beta, mask)

    y = ffn_forward(x, w1, b1, w2, b2, gamma, beta, mask)
    jax.block_until_ready(y)
    assert y.shape == (B, T, D)
    assert jnp.allclose(y, ref, atol=1e-3, rtol=1e-3), \
        float(jnp.max(jnp.abs(y - ref)))

    # 2) bf16 operand path (MXU-native) with f32 accumulation inside the kernel.
    y_bf16 = ffn_forward(x.astype(jnp.bfloat16),
                         w1.astype(jnp.bfloat16), b1,
                         w2.astype(jnp.bfloat16), b2,
                         gamma, beta, mask)
    jax.block_until_ready(y_bf16)
    assert float(jnp.max(jnp.abs(y_bf16.astype(jnp.float32) - ref))) < 0.15

    # 3) Force the H-chunked reduction path (h_chunk=128, H=192 -> padded to
    #    256, two chunks) to exercise the accumulator kernel + H zero-padding.
    B2, T2, D2 = 2, 9, 96
    H2 = 2 * D2
    (x2, w1_2, b1_2, w2_2, b2_2, g2, be2, m2, xf2, w1f2, w2f2) = _make_inputs(
        k2, B2, T2, D2, H2, jnp.float32)
    ref2 = _reference(xf2, w1f2, b1_2, w2f2, b2_2, g2, be2, m2)
    y2 = ffn_forward(x2, w1_2, b1_2, w2_2, b2_2, g2, be2, m2, h_chunk=128)
    jax.block_until_ready(y2)
    assert y2.shape == (B2, T2, D2)
    assert jnp.allclose(y2, ref2, atol=1e-3, rtol=1e-3), \
        float(jnp.max(jnp.abs(y2 - ref2)))

    print("KERNEL_OK")
</pallas_src>

<mosaic_0001>
module attributes {stable_mosaic.version = 11 : i64} {
  func.func @_ffn_fused_kernel(%arg0: i32, %arg1: memref<16x32xf32, #tpu.memory_space<vmem>>, %arg2: memref<32x64xf32, #tpu.memory_space<vmem>>, %arg3: memref<1x64xf32, #tpu.memory_space<vmem>>, %arg4: memref<64x32xf32, #tpu.memory_space<vmem>>, %arg5: memref<1x32xf32, #tpu.memory_space<vmem>>, %arg6: memref<1x32xf32, #tpu.memory_space<vmem>>, %arg7: memref<1x32xf32, #tpu.memory_space<vmem>>, %arg8: memref<16x1xf32, #tpu.memory_space<vmem>>, %arg9: memref<16x32xf32, #tpu.memory_space<vmem>>) attributes {dimension_semantics = [#tpu.dimension_semantics<parallel>], iteration_bounds = array<i64: 1>, scalar_prefetch = 0 : i64, scratch_operands = 0 : i64, tpu.core_type = #tpu.core_type<tc>, window_params = [{transform_indices = @transform_0, window_bounds = array<i64: 16, 32>}, {pipeline_mode = #tpu.pipeline_mode<synchronous>, transform_indices = @transform_1, window_bounds = array<i64: 32, 64>}, {pipeline_mode = #tpu.pipeline_mode<synchronous>, transform_indices = @transform_2, window_bounds = array<i64: 1, 64>}, {pipeline_mode = #tpu.pipeline_mode<synchronous>, transform_indices = @transform_3, window_bounds = array<i64: 64, 32>}, {pipeline_mode = #tpu.pipeline_mode<synchronous>, transform_indices = @transform_4, window_bounds = array<i64: 1, 32>}, {pipeline_mode = #tpu.pipeline_mode<synchronous>, transform_indices = @transform_5, window_bounds = array<i64: 1, 32>}, {pipeline_mode = #tpu.pipeline_mode<synchronous>, transform_indices = @transform_6, window_bounds = array<i64: 1, 32>}, {transform_indices = @transform_7, window_bounds = array<i64: 16, 1>}, {transform_indices = @transform_8, window_bounds = array<i64: 16, 32>}]} {
    %c0 = arith.constant 0 : index
    %c0_0 = arith.constant 0 : index
    %0 = vector.load %arg1[%c0, %c0_0] : memref<16x32xf32, #tpu.memory_space<vmem>>, vector<16x32xf32>
    %c0_1 = arith.constant 0 : index
    %c0_2 = arith.constant 0 : index
    %1 = vector.load %arg2[%c0_1, %c0_2] : memref<32x64xf32, #tpu.memory_space<vmem>>, vector<32x64xf32>
    %cst = arith.constant dense<0.000000e+00> : vector<16x64xf32>
    %2 = tpu.matmul %0, %1, %cst {dimension_numbers = #tpu.dot_dimension_numbers<[1], [0], [0], [1], [0, 0, 1, 1], [], []>} : vector<16x32xf32>, vector<32x64xf32>, vector<16x64xf32> -> vector<16x64xf32>
    %c0_3 = arith.constant 0 : index
    %c0_4 = arith.constant 0 : index
    %3 = vector.load %arg3[%c0_3, %c0_4] : memref<1x64xf32, #tpu.memory_space<vmem>>, vector<1x64xf32>
    %4 = vector.broadcast %3 : vector<1x64xf32> to vector<16x64xf32>
    %5 = arith.addf %2, %4 : vector<16x64xf32>
    %cst_5 = arith.constant 0.000000e+00 : f32
    %6 = vector.broadcast %cst_5 : f32 to vector<16x64xf32>
    %7 = arith.maximumf %5, %6 : vector<16x64xf32>
    %c0_6 = arith.constant 0 : index
    %c0_7 = arith.constant 0 : index
    %8 = vector.load %arg4[%c0_6, %c0_7] : memref<64x32xf32, #tpu.memory_space<vmem>>, vector<64x32xf32>
    %cst_8 = arith.constant dense<0.000000e+00> : vector<16x32xf32>
    %9 = tpu.matmul %7, %8, %cst_8 {dimension_numbers = #tpu.dot_dimension_numbers<[1], [0], [0], [1], [0, 0, 1, 1], [], []>} : vector<16x64xf32>, vector<64x32xf32>, vector<16x32xf32> -> vector<16x32xf32>
    %c0_9 = arith.constant 0 : index
    %c0_10 = arith.constant 0 : index
    %10 = vector.load %arg1[%c0_9, %c0_10] : memref<16x32xf32, #tpu.memory_space<vmem>>, vector<16x32xf32>
    %c0_11 = arith.constant 0 : index
    %c0_12 = arith.constant 0 : index
    %11 = vector.load %arg5[%c0_11, %c0_12] : memref<1x32xf32, #tpu.memory_space<vmem>>, vector<1x32xf32>
    %c0_13 = arith.constant 0 : index
    %c0_14 = arith.constant 0 : index
    %12 = vector.load %arg6[%c0_13, %c0_14] : memref<1x32xf32, #tpu.memory_space<vmem>>, vector<1x32xf32>
    %c0_15 = arith.constant 0 : index
    %c0_16 = arith.constant 0 : index
    %13 = vector.load %arg7[%c0_15, %c0_16] : memref<1x32xf32, #tpu.memory_space<vmem>>, vector<1x32xf32>
    %c0_17 = arith.constant 0 : index
    %c0_18 = arith.constant 0 : index
    %14 = vector.load %arg8[%c0_17, %c0_18] : memref<16x1xf32, #tpu.memory_space<vmem>>, vector<16x1xf32>
    %15 = vector.broadcast %11 : vector<1x32xf32> to vector<16x32xf32>
    %16 = arith.addf %9, %15 : vector<16x32xf32>
    %17 = arith.addf %16, %10 : vector<16x32xf32>
    %cst_19 = arith.constant dense<0.000000e+00> : vector<16xf32>
    %18 = vector.multi_reduction <add>, %17, %cst_19 [1] : vector<16x32xf32> to vector<16xf32>
    %19 = vector.shape_cast %18 : vector<16xf32> to vector<16x1xf32>
    %cst_20 = arith.constant 3.200000e+01 : f32
    %20 = vector.broadcast %cst_20 : f32 to vector<16x1xf32>
    %21 = arith.divf %19, %20 : vector<16x1xf32>
    %22 = vector.broadcast %21 : vector<16x1xf32> to vector<16x32xf32>
    %23 = arith.subf %17, %22 : vector<16x32xf32>
    %24 = arith.mulf %23, %23 : vector<16x32xf32>
    %cst_21 = arith.constant dense<0.000000e+00> : vector<16xf32>
    %25 = vector.multi_reduction <add>, %24, %cst_21 [1] : vector<16x32xf32> to vector<16xf32>
    %26 = vector.shape_cast %25 : vector<16xf32> to vector<16x1xf32>
    %cst_22 = arith.constant 3.200000e+01 : f32
    %27 = vector.broadcast %cst_22 : f32 to vector<16x1xf32>
    %28 = arith.divf %26, %27 : vector<16x1xf32>
    %cst_23 = arith.constant 9.99999974E-6 : f32
    %29 = vector.broadcast %cst_23 : f32 to vector<16x1xf32>
    %30 = arith.addf %28, %29 : vector<16x1xf32>
    %31 = math.rsqrt %30 : vector<16x1xf32>
    %32 = vector.broadcast %31 : vector<16x1xf32> to vector<16x32xf32>
    %33 = arith.mulf %23, %32 : vector<16x32xf32>
    %34 = vector.broadcast %12 : vector<1x32xf32> to vector<16x32xf32>
    %35 = arith.mulf %33, %34 : vector<16x32xf32>
    %36 = vector.broadcast %13 : vector<1x32xf32> to vector<16x32xf32>
    %37 = arith.addf %35, %36 : vector<16x32xf32>
    %38 = vector.broadcast %14 : vector<16x1xf32> to vector<16x32xf32>
    %39 = arith.mulf %37, %38 : vector<16x32xf32>
    %c0_24 = arith.constant 0 : index
    %c0_25 = arith.constant 0 : index
    %40 = vector.load %arg9[%c0_24, %c0_25] : memref<16x32xf32, #tpu.memory_space<vmem>>, vector<16x32xf32>
    tpu.vector_store %arg9[%c0_24, %c0_25], %39 {strides = array<i32>} : memref<16x32xf32, #tpu.memory_space<vmem>>, vector<16x32xf32>,
    return
  }
  func.func @transform_0(%arg0: i32) -> (i32, i32) {
    %c0_i32 = arith.constant 0 : i32
    %c0_i32_0 = arith.constant 0 : i32
    return %arg0, %c0_i32 : i32, i32
  }
  func.func @transform_1(%arg0: i32) -> (i32, i32) {
    %c0_i32 = arith.constant 0 : i32
    %c0_i32_0 = arith.constant 0 : i32
    %c0_i32_1 = arith.constant 0 : i32
    return %c0_i32, %c0_i32_0 : i32, i32
  }
  func.func @transform_2(%arg0: i32) -> (i32, i32) {
    %c0_i32 = arith.constant 0 : i32
    %c0_i32_0 = arith.constant 0 : i32
    %c0_i32_1 = arith.constant 0 : i32
    return %c0_i32, %c0_i32_0 : i32, i32
  }
  func.func @transform_3(%arg0: i32) -> (i32, i32) {
    %c0_i32 = arith.constant 0 : i32
    %c0_i32_0 = arith.constant 0 : i32
    %c0_i32_1 = arith.constant 0 : i32
    return %c0_i32, %c0_i32_0 : i32, i32
  }
  func.func @transform_4(%arg0: i32) -> (i32, i32) {
    %c0_i32 = arith.constant 0 : i32
    %c0_i32_0 = arith.constant 0 : i32
    %c0_i32_1 = arith.constant 0 : i32
    return %c0_i32, %c0_i32_0 : i32, i32
  }
  func.func @transform_5(%arg0: i32) -> (i32, i32) {
    %c0_i32 = arith.constant 0 : i32
    %c0_i32_0 = arith.constant 0 : i32
    %c0_i32_1 = arith.constant 0 : i32
    return %c0_i32, %c0_i32_0 : i32, i32
  }
  func.func @transform_6(%arg0: i32) -> (i32, i32) {
    %c0_i32 = arith.constant 0 : i32
    %c0_i32_0 = arith.constant 0 : i32
    %c0_i32_1 = arith.constant 0 : i32
    return %c0_i32, %c0_i32_0 : i32, i32
  }
  func.func @transform_7(%arg0: i32) -> (i32, i32) {
    %c0_i32 = arith.constant 0 : i32
    %c0_i32_0 = arith.constant 0 : i32
    return %arg0, %c0_i32 : i32, i32
  }
  func.func @transform_8(%arg0: i32) -> (i32, i32) {
    %c0_i32 = arith.constant 0 : i32
    %c0_i32_0 = arith.constant 0 : i32
    return %arg0, %c0_i32 : i32, i32
  }
}

</mosaic_0001>

<llo_original>
// kernel: ffn_forward.1
$region0: #{ffn_forward.1}
  #allocation0 [shape = 'u32[]', space=smem, size = 0x4, offset = 0x4, fixed_abs, tag = 'smem constant byte address 0x4 - core index']
  #allocation1 [shape = 'u32[144,128]{1,0:T(1,128)}', space=vmem, size = 0x12000, scoped, tag = 'internal scratch']
  %s0 = inlined_call_operand.vmem [shape: f32[16,32], index: 0, kind: input, shape index: {}]
  %s1 = inlined_call_operand.vmem [shape: f32[32,64], index: 1, kind: input, shape index: {}]
  %s2 = inlined_call_operand.vmem [shape: f32[1,64], index: 2, kind: input, shape index: {}]
  %s3 = inlined_call_operand.vmem [shape: f32[64,32], index: 3, kind: input, shape index: {}]
  %s4 = inlined_call_operand.vmem [shape: f32[1,32], index: 4, kind: input, shape index: {}]
  %s5 = inlined_call_operand.vmem [shape: f32[1,32], index: 5, kind: input, shape index: {}]
  %s6 = inlined_call_operand.vmem [shape: f32[1,32], index: 6, kind: input, shape index: {}]
  %s7 = inlined_call_operand.vmem [shape: f32[16,1], index: 7, kind: input, shape index: {}]
  %s8 = inlined_call_operand.vmem [shape: f32[16,32], index: 8, kind: output, shape index: {}]
  %s9 = sld [smem:[#allocation0]]
  $region42: #{ffn_forward.1} parent=0
    _
  %s11 = ssub.s32 1, %s9
  %s12 = scalar_select 0, %s11, %s9
  // Predicated region
  $region2: #{ffn_forward.1} parent=0 // pred_check
    _
  $region3: #{ffn_forward.1} parent=0 // pred_check_branch
    %14 = sbr.rel (0) target = $region5
  $region4: #{ffn_forward.1} parent=0 // pred_region
    _
  $region5: #{ffn_forward.1} parent=0 // pred_fallthru
    _
  // Predicated region
  $region6: #{ffn_forward.1} parent=0 // pred_check
    _
  $region7: #{ffn_forward.1} parent=0 // pred_check_branch
    %16 = sbr.rel (0) target = $region9
  $region8: #{ffn_forward.1} parent=0 // pred_region
    _
  $region9: #{ffn_forward.1} parent=0 // pred_fallthru
    _
  // Predicated region
  $region10: #{ffn_forward.1} parent=0 // pred_check
    _
  $region11: #{ffn_forward.1} parent=0 // pred_check_branch
    %18 = sbr.rel (0) target = $region13
  $region12: #{ffn_forward.1} parent=0 // pred_region
    _
  $region13: #{ffn_forward.1} parent=0 // pred_fallthru
    _
  // Predicated region
  $region14: #{ffn_forward.1} parent=0 // pred_check
    _
  $region15: #{ffn_forward.1} parent=0 // pred_check_branch
    %20 = sbr.rel (0) target = $region17
  $region16: #{ffn_forward.1} parent=0 // pred_region
    _
  $region17: #{ffn_forward.1} parent=0 // pred_fallthru
    _
  // Predicated region
  $region18: #{ffn_forward.1} parent=0 // pred_check
    _
  $region19: #{ffn_forward.1} parent=0 // pred_check_branch
    %22 = sbr.rel (0) target = $region21
  $region20: #{ffn_forward.1} parent=0 // pred_region
    _
  $region21: #{ffn_forward.1} parent=0 // pred_fallthru
    _
  // Predicated region
  $region22: #{ffn_forward.1} parent=0 // pred_check
    _
  $region23: #{ffn_forward.1} parent=0 // pred_check_branch
    %24 = sbr.rel (0) target = $region25
  $region24: #{ffn_forward.1} parent=0 // pred_region
    _
  $region25: #{ffn_forward.1} parent=0 // pred_fallthru
    _
  // Predicated region
  $region26: #{ffn_forward.1} parent=0 // pred_check
    _
  $region27: #{ffn_forward.1} parent=0 // pred_check_branch
    %26 = sbr.rel (0) target = $region29
  $region28: #{ffn_forward.1} parent=0 // pred_region
    _
  $region29: #{ffn_forward.1} parent=0 // pred_fallthru
    _
  // Predicated region
  $region30: #{ffn_forward.1} parent=0 // pred_check
    _
  $region31: #{ffn_forward.1} parent=0 // pred_check_branch
    %28 = sbr.rel (0) target = $region33
  $region32: #{ffn_forward.1} parent=0 // pred_region
    _
  $region33: #{ffn_forward.1} parent=0 // pred_fallthru
    _
  %v29 = vld [vmem:[%s0] sm:$0xff]
  %v30 = vld [vmem:[%s0 + $0x8] sm:$0xff]
  %v31 = vld [vmem:[%s1] sm:$0xff]
  %v32 = vld [vmem:[%s1 + $0x8] sm:$0xff]
  %v33 = vld [vmem:[%s1 + $0x10] sm:$0xff]
  %v34 = vld [vmem:[%s1 + $0x18] sm:$0xff]
  %v35 = vld [vmem:[%s2] sm:$0x1]
  %v37 = vlaneseq
  %v38 = vshrl.u32 %v37, 7
  %v39 = vsub.s32 0, %v38
  %v40 = vrot.slane %v35, %v39
  %vm42 = vcmask 261120
  %v44 = vsel %vm42, %v29, 0
  %v47 = vsel %vm42, %v30, 0
  %49 = vmatprep.subr.mxu0 0.0
  %50 = vmatpush1.msra.mxu0 %v31
  %51 = vmatprep.subr.mxu0 0.0
  %52 = vmatpush1.msra.mxu0 %v32
  %53 = vmatprep.subr.mxu0 0.0
  %54 = vmatpush1.msra.mxu0 %v33
  %55 = vmatprep.subr.mxu0 0.0
  %56 = vmatpush1.msra.mxu0 %v34
  %57 = vmatprep.subr.mxu0 0.0
  %58 = vmatpush1.msra.mxu0 0.0
  %59 = vmatprep.subr.mxu0 0.0
  %60 = vmatpush1.msra.mxu0 0.0
  %61 = vmatprep.subr.mxu0 0.0
  %62 = vmatpush1.msra.mxu0 0.0
  %63 = vmatprep.subr.mxu0 0.0
  %64 = vmatpush1.msra.mxu0 0.0
  %65 = vmatprep.subr.mxu0 0.0
  %66 = vmatpush1.msra.mxu0 0.0
  %67 = vmatprep.subr.mxu0 0.0
  %68 = vmatpush1.msra.mxu0 0.0
  %69 = vmatprep.subr.mxu0 0.0
  %70 = vmatpush1.msra.mxu0 0.0
  %71 = vmatprep.subr.mxu0 0.0
  %72 = vmatpush1.msra.mxu0 0.0
  %73 = vmatprep.subr.mxu0 0.0
  %74 = vmatpush1.msra.mxu0 0.0
  %75 = vmatprep.subr.mxu0 0.0
  %76 = vmatpush1.msra.mxu0 0.0
  %77 = vmatprep.subr.mxu0 0.0
  %78 = vmatpush1.msra.mxu0 0.0
  %79 = vmatprep.subr.mxu0 0.0
  %80 = vmatpush1.msra.mxu0 0.0
  %81 = vmatprep.subr.mxu0 0.0
  %82 = vmatpush1.msra.mxu0 0.0
  %83 = vmatprep.subr.mxu0 0.0
  %84 = vmatpush1.msra.mxu0 0.0
  %85 = vmatprep.subr.mxu0 0.0
  %86 = vmatpush1.msra.mxu0 0.0
  %87 = vmatprep.subr.mxu0 0.0
  %88 = vmatpush1.msra.mxu0 0.0
  %89 = vmatprep.subr.mxu0 0.0
  %90 = vmatpush1.msra.mxu0 0.0
  %91 = vmatprep.subr.mxu0 0.0
  %92 = vmatpush1.msra.mxu0 0.0
  %93 = vmatprep.subr.mxu0 0.0
  %94 = vmatpush1.msra.mxu0 0.0
  %95 = vmatprep.subr.mxu0 0.0
  %96 = vmatpush1.msra.mxu0 0.0
  %97 = vmatprep.subr.mxu0 0.0
  %98 = vmatpush1.msra.mxu0 0.0
  %99 = vmatprep.subr.mxu0 0.0
  %100 = vmatpush1.msra.mxu0 0.0
  %101 = vmatprep.subr.mxu0 0.0
  %102 = vmatpush1.msra.mxu0 0.0
  %103 = vmatprep.subr.mxu0 0.0
  %104 = vmatpush1.msra.mxu0 0.0
  %105 = vmatprep.subr.mxu0 0.0
  %106 = vmatpush1.msra.mxu0 0.0
  %107 = vmatprep.subr.mxu0 0.0
  %108 = vmatpush1.msra.mxu0 0.0
  %109 = vmatprep.subr.mxu0 0.0
  %110 = vmatpush1.msra.mxu0 0.0
  %111 = vmatprep.subr.mxu0 0.0
  %112 = vmatpush1.msra.mxu0 0.0
  %113 = vmatprep.mubr.f32.mxu0 0.0
  %114 = vmatmul.mubr.f32.gmra.mrb[0].mxu0 %v44
  %v115 = vpop.f32.mrb[0].mxu0
  %v116 = vadd.f32 %v40, %v115
  %v117 = vpop.f32.mrb[0].mxu0
  %118 = vmatprep.mubr.f32.mxu0 0.0
  %119 = vmatmul.mubr.f32.gmra.mrb[0].mxu0 %v47
  %v120 = vpop.f32.mrb[0].mxu0
  %v121 = vadd.f32 %v40, %v120
  %v122 = vpop.f32.mrb[0].mxu0
  %123 = vdwg.mxu0
  %v124 = vmax.f32 %v116, 0.0
  %v125 = vmax.f32 %v121, 0.0
  %v126 = vld [vmem:[%s3] sm:$0xff]
  %v127 = vld [vmem:[%s3 + $0x8] sm:$0xff]
  %v128 = vld [vmem:[%s3 + $0x10] sm:$0xff]
  %v129 = vld [vmem:[%s3 + $0x18] sm:$0xff]
  %v130 = vld [vmem:[%s3 + $0x20] sm:$0xff]
  %v131 = vld [vmem:[%s3 + $0x28] sm:$0xff]
  %v132 = vld [vmem:[%s3 + $0x30] sm:$0xff]
  %v133 = vld [vmem:[%s3 + $0x38] sm:$0xff]
  %v134 = vld [vmem:[%s4] sm:$0x1]
  %v135 = vld [vmem:[%s5] sm:$0x1]
  %v136 = vld [vmem:[%s6] sm:$0x1]
  %v137 = vld [vmem:[%s7] sm:$0xff]
  %v138 = vld [vmem:[%s7 + $0x8] sm:$0xff]
  %v140 = vlaneseq
  %v141 = vshrl.u32 %v140, 7
  %v142 = vsub.s32 0, %v141
  %v143 = vrot.slane %v134, %v142
  %vm145 = vcmask 523264
  %v147 = vsel %vm145, %v124, 0
  %v150 = vsel %vm145, %v125, 0
  %152 = vmatprep.subr.mxu0 0.0
  %153 = vmatpush1.msra.mxu0 %v126
  %154 = vmatprep.subr.mxu0 0.0
  %155 = vmatpush1.msra.mxu0 %v127
  %156 = vmatprep.subr.mxu0 0.0
  %157 = vmatpush1.msra.mxu0 %v128
  %158 = vmatprep.subr.mxu0 0.0
  %159 = vmatpush1.msra.mxu0 %v129
  %160 = vmatprep.subr.mxu0 0.0
  %161 = vmatpush1.msra.mxu0 %v130
  %162 = vmatprep.subr.mxu0 0.0
  %163 = vmatpush1.msra.mxu0 %v131
  %164 = vmatprep.subr.mxu0 0.0
  %165 = vmatpush1.msra.mxu0 %v132
  %166 = vmatprep.subr.mxu0 0.0
  %167 = vmatpush1.msra.mxu0 %v133
  %168 = vmatprep.subr.mxu0 0.0
  %169 = vmatpush1.msra.mxu0 0.0
  %170 = vmatprep.subr.mxu0 0.0
  %171 = vmatpush1.msra.mxu0 0.0
  %172 = vmatprep.subr.mxu0 0.0
  %173 = vmatpush1.msra.mxu0 0.0
  %174 = vmatprep.subr.mxu0 0.0
  %175 = vmatpush1.msra.mxu0 0.0
  %176 = vmatprep.subr.mxu0 0.0
  %177 = vmatpush1.msra.mxu0 0.0
  %178 = vmatprep.subr.mxu0 0.0
  %179 = vmatpush1.msra.mxu0 0.0
  %180 = vmatprep.subr.mxu0 0.0
  %181 = vmatpush1.msra.mxu0 0.0
  %182 = vmatprep.subr.mxu0 0.0
  %183 = vmatpush1.msra.mxu0 0.0
  %184 = vmatprep.subr.mxu0 0.0
  %185 = vmatpush1.msra.mxu0 0.0
  %186 = vmatprep.subr.mxu0 0.0
  %187 = vmatpush1.msra.mxu0 0.0
  %188 = vmatprep.subr.mxu0 0.0
  %189 = vmatpush1.msra.mxu0 0.0
  %190 = vmatprep.subr.mxu0 0.0
  %191 = vmatpush1.msra.mxu0 0.0
  %192 = vmatprep.subr.mxu0 0.0
  %193 = vmatpush1.msra.mxu0 0.0
  %194 = vmatprep.subr.mxu0 0.0
  %195 = vmatpush1.msra.mxu0 0.0
  %196 = vmatprep.subr.mxu0 0.0
  %197 = vmatpush1.msra.mxu0 0.0
  %198 = vmatprep.subr.mxu0 0.0
  %199 = vmatpush1.msra.mxu0 0.0
  %200 = vmatprep.subr.mxu0 0.0
  %201 = vmatpush1.msra.mxu0 0.0
  %202 = vmatprep.subr.mxu0 0.0
  %203 = vmatpush1.msra.mxu0 0.0
  %204 = vmatprep.subr.mxu0 0.0
  %205 = vmatpush1.msra.mxu0 0.0
  %206 = vmatprep.subr.mxu0 0.0
  %207 = vmatpush1.msra.mxu0 0.0
  %208 = vmatprep.subr.mxu0 0.0
  %209 = vmatpush1.msra.mxu0 0.0
  %210 = vmatprep.subr.mxu0 0.0
  %211 = vmatpush1.msra.mxu0 0.0
  %212 = vmatprep.subr.mxu0 0.0
  %213 = vmatpush1.msra.mxu0 0.0
  %214 = vmatprep.subr.mxu0 0.0
  %215 = vmatpush1.msra.mxu0 0.0
  %216 = vmatprep.mubr.f32.mxu0 0.0
  %217 = vmatmul.mubr.f32.gmra.mrb[0].mxu0 %v147
  %v218 = vpop.f32.mrb[0].mxu0
  %v219 = vadd.f32 %v143, %v218
  %v220 = vpop.f32.mrb[0].mxu0
  %221 = vmatprep.mubr.f32.mxu0 0.0
  %222 = vmatmul.mubr.f32.gmra.mrb[0].mxu0 %v150
  %v223 = vpop.f32.mrb[0].mxu0
  %v224 = vadd.f32 %v143, %v223
  %v225 = vpop.f32.mrb[0].mxu0
  %226 = vdwg.mxu0
  %v227 = vadd.f32 %v219, %v29
  %v228 = vadd.f32 %v224, %v30
  %v229 = vsel %vm42, %v227, 0.0
  %230 = vadd.xlane.f32.xlu0 %v229
  %v231 = vpop.xlane.xlu0 %230
  %v232 = vsel %vm42, %v228, 0.0
  %233 = vadd.xlane.f32.xlu0 %v232
  %v234 = vpop.xlane.xlu0 %233
  %v235 = vrcp.pop 32.0
  %v236 = vmul.f32 %v231, %v235
  %v237 = vmul.f32 %v234, %v235
  %v238 = vsub.f32 %v227, %v236
  %v239 = vsub.f32 %v228, %v237
  %v240 = vmul.f32 %v238, %v238
  %v241 = vmul.f32 %v239, %v239
  %v242 = vsel %vm42, %v240, 0.0
  %243 = vadd.xlane.f32.xlu0 %v242
  %v244 = vpop.xlane.xlu0 %243
  %v245 = vsel %vm42, %v241, 0.0
  %246 = vadd.xlane.f32.xlu0 %v245
  %v247 = vpop.xlane.xlu0 %246
  %v248 = vmul.f32 %v244, %v235
  %v249 = vmul.f32 %v247, %v235
  %v250 = vadd.f32 %v248, 1e-05
  %v251 = vadd.f32 %v249, 1e-05
  %v252 = vrsqrt.pop %v250
  %v253 = vrsqrt.pop %v251
  %v254 = vmul.f32 %v238, %v252
  %v255 = vmul.f32 %v239, %v253
  %v257 = vlaneseq
  %v258 = vshrl.u32 %v257, 7
  %v259 = vsub.s32 0, %v258
  %v260 = vrot.slane %v135, %v259
  %v262 = vmul.f32 %v254, %v260
  %v263 = vmul.f32 %v255, %v260
  %v265 = vlaneseq
  %v266 = vshrl.u32 %v265, 7
  %v267 = vsub.s32 0, %v266
  %v268 = vrot.slane %v136, %v267
  %v270 = vadd.f32 %v262, %v268
  %v271 = vadd.f32 %v263, %v268
  %273 = vset.pattern.permute.xlu0 0
  %274 = vperm.xlu0 %273, %v137
  %v275 = vpop.permute.xlu0 %274
  %278 = vset.pattern.permute.xlu0 0
  %279 = vperm.xlu0 %278, %v138
  %v280 = vpop.permute.xlu0 %279
  %v282 = vmul.f32 %v270, %v275
  %v283 = vmul.f32 %v271, %v280
  %284 = vst.msk [vmem:[%s8] sm:$0xff] %vm42, %v282
  %285 = vst.msk [vmem:[%s8 + $0x8] sm:$0xff] %vm42, %v283
  // Predicated region
  $region34: #{ffn_forward.1} parent=0 // pred_check
    _
  $region35: #{ffn_forward.1} parent=0 // pred_check_branch
    %287 = sbr.rel (0) target = $region37
  $region36: #{ffn_forward.1} parent=0 // pred_region
    _
  $region37: #{ffn_forward.1} parent=0 // pred_fallthru
    _
  // Predicated region
  $region38: #{ffn_forward.1} parent=0 // pred_check
    _
  $region39: #{ffn_forward.1} parent=0 // pred_check_branch
    %289 = sbr.rel (0) target = $region41
  $region40: #{ffn_forward.1} parent=0 // pred_region
    _
  $region41: #{ffn_forward.1} parent=0 // pred_fallthru
    _

</llo_original>
